<compile_context>
chip_gen: v7x
topology: tpu7x:2x2x1
jax: 0.10.0
libtpu: 0.0.40
codegen_flags: <defaults>
</compile_context>

<pallas_src>
import functools

import jax
import jax.numpy as jnp
from jax.experimental import pallas as pl
from jax.experimental.pallas import tpu as pltpu

_LANE = 128
_SUBLANE = 8


def _round_up(n, m):
    return ((n + m - 1) // m) * m


@functools.lru_cache(maxsize=1)
def _vmem_capacity_bytes():
    """Best-effort query of per-core VMEM capacity; conservative fallback."""
    try:
        info = pltpu.get_tpu_info()
        cap = int(getattr(info, "vmem_capacity_bytes", 0))
        if cap > 0:
            return cap
    except Exception:
        pass
    return 64 * 1024 * 1024  # conservative (v7x-sized) fallback


# ----------------------------- Pallas kernel ------------------------------- #

def _mlp_kernel(x_ref, w1_ref, b1_ref, w2_ref, b2_ref, o_ref):
    """One (row-tile, ff-chunk) step of o = gelu(x @ W1 + b1) @ W2 + b2.

    o_ref is f32 and j-invariant, so it is the resident accumulator.
    """
    j = pl.program_id(1)

    @pl.when(j == 0)
    def _():
        o_ref[...] = jnp.zeros_like(o_ref)

    # First matmul: bf16 x bf16 operands, f32 MXU accumulation.
    h = jnp.dot(x_ref[...], w1_ref[...], preferred_element_type=jnp.float32)
    # Bias + GELU in f32 (VPU/EUP); elementwise over ff, so per-chunk is exact.
    h = jax.nn.gelu(h + b1_ref[...].astype(jnp.float32), approximate=True)
    # Second matmul chunk, accumulated directly into the resident f32 output.
    o_ref[...] += jnp.dot(h.astype(w2_ref.dtype), w2_ref[...],
                          preferred_element_type=jnp.float32)

    @pl.when(j == pl.num_programs(1) - 1)
    def _():
        o_ref[...] += b2_ref[...].astype(jnp.float32)


def _choose_tiles(m_rows, h_pad, f_pad):
    """Pick (tm, tff, vmem_limit) that are (8,128)-aligned and fit VMEM.

    Generation-aware: big-VMEM chips (v5e/v6e, 128 MiB) get larger row tiles
    (less weight re-streaming); small-VMEM chips (v7x, 64 MiB/TC) get a tighter
    budget and a guaranteed >=2 row tiles so the 'parallel' axis splits across
    both TensorCores.
    """
    vmem_cap = _vmem_capacity_bytes()
    small_vmem = vmem_cap <= 96 * 1024 * 1024   # v7x-like
    budget = (36 if small_vmem else 96) * 1024 * 1024
    vmem_limit = (50 if small_vmem else 112) * 1024 * 1024

    # ff chunk: largest of 512/256/128 that divides f_pad; never drop below 256
    # when ff allows it (keeps the 256-wide MXU on v6e/v7x fully fed).
    tff = _LANE
    for cand in (512, 256, 128):
        if f_pad % cand == 0:
            tff = cand
            break
    min_tff = 256 if f_pad % 256 == 0 else _LANE

    # Row tile: as large as VMEM allows (amortizes weight re-streaming).
    max_tm = 256 if small_vmem else 512
    tm = max(_SUBLANE, min(max_tm, _round_up(m_rows, _SUBLANE)))

    def vmem_bytes(tm_, tff_):
        return (2 * tm_ * h_pad * 2            # x tile, bf16, double-buffered
                + 2 * h_pad * tff_ * 2         # W1 chunk, bf16, double-buffered
                + 2 * tff_ * h_pad * 2         # W2 chunk, bf16, double-buffered
                + 2 * (tff_ + h_pad) * 2       # biases
                + 2 * tm_ * h_pad * 4)         # f32 output tile (resident acc)

    # Shrink tm first (keep the MXU contraction dim wide), then tff down to min.
    while vmem_bytes(tm, tff) > budget and tm > _SUBLANE:
        tm = max(_SUBLANE, _round_up(tm // 2, _SUBLANE))
    while (vmem_bytes(tm, tff) > budget and tff > min_tff
           and f_pad % (tff // 2) == 0):
        tff //= 2

    # Megacore occupancy on v7x: make sure the row axis has >= 2 tiles.
    if small_vmem:
        while pl.cdiv(m_rows, tm) < 2 and tm > _SUBLANE:
            tm = max(_SUBLANE, _round_up(tm // 2, _SUBLANE))

    return tm, tff, vmem_limit


@jax.jit
def _mlp_forward(x2d, w1, b1, w2, b2):
    """x2d: [M, hidden] (f32); w/b already bf16 and padded to multiples of 128."""
    m_rows, hidden = x2d.shape
    h_pad, f_pad = w1.shape

    tm, tff, vmem_limit = _choose_tiles(m_rows, h_pad, f_pad)
    m_pad = _round_up(m_rows, tm)
    grid = (m_pad // tm, f_pad // tff)
    n_row_tiles = grid[0]

    # Pad rows / hidden only when necessary; otherwise a single cheap cast.
    needs_pad = (m_pad != m_rows) or (h_pad != hidden)
    if needs_pad:
        xp = jnp.zeros((m_pad, h_pad), jnp.bfloat16)
        xp = xp.at[:m_rows, :hidden].set(x2d.astype(jnp.bfloat16))
    else:
        xp = x2d.astype(jnp.bfloat16)

    cost = pl.CostEstimate(
        flops=4 * m_pad * h_pad * f_pad,           # two matmuls, 2 flops / MAC
        transcendentals=m_pad * f_pad,             # one tanh per GELU element
        bytes_accessed=(m_pad * h_pad * 2                              # x read once
                        + n_row_tiles * (w1.size + w2.size
                                         + b1.size + b2.size) * 2     # re-streamed
                        + m_pad * h_pad * 4),                          # f32 out
    )

    out = pl.pallas_call(
        _mlp_kernel,
        out_shape=jax.ShapeDtypeStruct((m_pad, h_pad), jnp.float32),
        grid_spec=pltpu.PrefetchScalarGridSpec(
            num_scalar_prefetch=0,
            grid=grid,
            in_specs=[
                pl.BlockSpec((tm, h_pad), lambda i, j: (i, 0)),   # x rows
                pl.BlockSpec((h_pad, tff), lambda i, j: (0, j)),  # W1 ff-chunk
                pl.BlockSpec((1, tff), lambda i, j: (0, j)),      # b1 ff-chunk
                pl.BlockSpec((tff, h_pad), lambda i, j: (j, 0)),  # W2 ff-chunk
                pl.BlockSpec((1, h_pad), lambda i, j: (0, 0)),    # b2
            ],
            out_specs=pl.BlockSpec((tm, h_pad), lambda i, j: (i, 0)),
        ),
        compiler_params=pltpu.CompilerParams(
            dimension_semantics=("parallel", "arbitrary"),
            vmem_limit_bytes=vmem_limit,
        ),
        cost_estimate=cost,
    )(xp, w1, b1, w2, b2)

    if needs_pad:
        return out[:m_rows, :hidden]
    return out


# --------------------------- Wrapper (the module) --------------------------- #

def _prepare_params(params, dtype=jnp.bfloat16):
    """Cast weights to bf16 once and zero-pad hidden/ff to multiples of 128."""
    w1, b1, w2, b2 = params["w1"], params["b1"], params["w2"], params["b2"]
    hidden, ff = w1.shape
    h_pad = _round_up(hidden, _LANE)
    f_pad = _round_up(ff, _LANE)
    w1p = jnp.zeros((h_pad, f_pad), dtype).at[:hidden, :ff].set(w1.astype(dtype))
    b1p = jnp.zeros((1, f_pad), dtype).at[:, :ff].set(
        b1.reshape(1, ff).astype(dtype))
    w2p = jnp.zeros((f_pad, h_pad), dtype).at[:ff, :hidden].set(w2.astype(dtype))
    b2p = jnp.zeros((1, h_pad), dtype).at[:, :hidden].set(
        b2.reshape(1, hidden).astype(dtype))
    return {"w1": w1p, "b1": b1p, "w2": w2p, "b2": b2p,
            "hidden": hidden, "ff": ff}


class MultiPrecModelWrapper:
    """JAX analogue of pmpd.modules.zoo.MultiPrecModelWrapper.

    `model_dict` maps str(precision) -> parameter pytree of a small MLP.
    """

    def __init__(self, model_dict, config=None):
        self.models = {name: _prepare_params(p) for name, p in model_dict.items()}
        self.precisions = list([int(p) for p in self.models.keys()])
        self.config = config

    def forward(self, x, precision, **kwargs):
        # Same validation semantics as the PyTorch wrapper: range check only,
        # an in-range but missing key raises KeyError (dict lookup), not ValueError.
        if precision < 0 or precision > max(self.precisions):
            raise ValueError('Invalid precision value')
        selected_model = self.models[str(precision)]
        b, s, h = x.shape
        out2d = _mlp_forward(
            x.reshape(b * s, h),
            selected_model["w1"], selected_model["b1"],
            selected_model["w2"], selected_model["b2"],
        )
        return out2d.reshape(b, s, h)

    __call__ = forward


def _make_model_params(precision, hidden, ff, dtype=jnp.float32):
    """Deterministic per-precision parameter init (synthetic; no checkpoints)."""
    key = jax.random.PRNGKey(precision)
    k1, k2, k3, k4 = jax.random.split(key, 4)
    scale1 = 1.0 / jnp.sqrt(hidden)
    scale2 = 1.0 / jnp.sqrt(ff)
    return {
        "w1": (jax.random.normal(k1, (hidden, ff), dtype) * scale1),
        "b1": (jax.random.normal(k2, (1, ff), dtype) * 0.01),
        "w2": (jax.random.normal(k3, (ff, hidden), dtype) * scale2),
        "b2": (jax.random.normal(k4, (1, hidden), dtype) * 0.01),
    }


# ---------------------------------- main ------------------------------------ #

if __name__ == "__main__":
    batch, seq, hidden, ff = 2, 8, 32, 64
    precisions = [2, 4, 8]

    model_dict = {str(p): _make_model_params(p, hidden, ff) for p in precisions}
    wrapper = MultiPrecModelWrapper(model_dict, config={"precisions": precisions})

    x = jax.random.normal(jax.random.PRNGKey(0), (batch, seq, hidden), jnp.float32)

    # Run the kernel for one selected precision (mirrors forward(x, precision)).
    out = wrapper(x, precision=4)
    jax.block_until_ready(out)
    assert out.shape == (batch, seq, hidden)
    assert out.dtype == jnp.float32

    # Sanity check against a pure-JAX reference using the same bf16-rounded
    # operands and f32 accumulation that the kernel uses.
    p = model_dict["4"]

    def _bf(a):
        return a.astype(jnp.bfloat16).astype(jnp.float32)

    xb = _bf(x.reshape(-1, hidden))
    h_ref = jax.nn.gelu(xb @ _bf(p["w1"]) + _bf(p["b1"]), approximate=True)
    ref = (_bf(h_ref) @ _bf(p["w2"]) + _bf(p["b2"])).reshape(batch, seq, hidden)
    max_err = float(jnp.max(jnp.abs(out - ref)))
    assert jnp.allclose(out, ref, atol=3e-2, rtol=3e-2), max_err

    # Validation semantics of the wrapper.
    for bad in (-1, 16):
        try:
            wrapper(x, precision=bad)
            raise AssertionError("expected ValueError")
        except ValueError:
            pass

    print("KERNEL_OK")
</pallas_src>

<mosaic_0001>
module attributes {stable_mosaic.version = 11 : i64} {
  func.func @_mlp_kernel(%arg0: i32, %arg1: i32, %arg2: memref<8x128xbf16, #tpu.memory_space<vmem>>, %arg3: memref<128x128xbf16, #tpu.memory_space<vmem>>, %arg4: memref<1x128xbf16, #tpu.memory_space<vmem>>, %arg5: memref<128x128xbf16, #tpu.memory_space<vmem>>, %arg6: memref<1x128xbf16, #tpu.memory_space<vmem>>, %arg7: memref<8x128xf32, #tpu.memory_space<vmem>>) attributes {dimension_semantics = [#tpu.dimension_semantics<parallel>, #tpu.dimension_semantics<arbitrary>], iteration_bounds = array<i64: 2, 1>, scalar_prefetch = 0 : i64, scratch_operands = 0 : i64, tpu.core_type = #tpu.core_type<tc>, window_params = [{transform_indices = @transform_0, window_bounds = array<i64: 8, 128>}, {transform_indices = @transform_1, window_bounds = array<i64: 128, 128>}, {transform_indices = @transform_2, window_bounds = array<i64: 1, 128>}, {transform_indices = @transform_3, window_bounds = array<i64: 128, 128>}, {pipeline_mode = #tpu.pipeline_mode<synchronous>, transform_indices = @transform_4, window_bounds = array<i64: 1, 128>}, {transform_indices = @transform_5, window_bounds = array<i64: 8, 128>}]} {
    %c0_i32 = arith.constant 0 : i32
    %0 = arith.cmpi eq, %arg1, %c0_i32 : i32
    %1 = arith.extui %0 : i1 to i32
    %c0_i32_0 = arith.constant 0 : i32
    %2 = arith.cmpi ne, %1, %c0_i32_0 : i32
    scf.if %2 {
      %cst_19 = arith.constant 0.000000e+00 : f32
      %32 = vector.broadcast %cst_19 : f32 to vector<8x128xf32>
      %c0_20 = arith.constant 0 : index
      %c0_21 = arith.constant 0 : index
      %33 = vector.load %arg7[%c0_20, %c0_21] : memref<8x128xf32, #tpu.memory_space<vmem>>, vector<8x128xf32>
      tpu.vector_store %arg7[%c0_20, %c0_21], %32 {strides = array<i32>} : memref<8x128xf32, #tpu.memory_space<vmem>>, vector<8x128xf32>,
    } else {
    }
    %c0 = arith.constant 0 : index
    %c0_1 = arith.constant 0 : index
    %3 = vector.load %arg2[%c0, %c0_1] : memref<8x128xbf16, #tpu.memory_space<vmem>>, vector<8x128xbf16>
    %c0_2 = arith.constant 0 : index
    %c0_3 = arith.constant 0 : index
    %4 = vector.load %arg3[%c0_2, %c0_3] : memref<128x128xbf16, #tpu.memory_space<vmem>>, vector<128x128xbf16>
    %cst = arith.constant dense<0.000000e+00> : vector<8x128xf32>
    %5 = tpu.matmul %3, %4, %cst {dimension_numbers = #tpu.dot_dimension_numbers<[1], [0], [0], [1], [0, 0, 1, 1], [], []>} : vector<8x128xbf16>, vector<128x128xbf16>, vector<8x128xf32> -> vector<8x128xf32>
    %c0_4 = arith.constant 0 : index
    %c0_5 = arith.constant 0 : index
    %6 = vector.load %arg4[%c0_4, %c0_5] : memref<1x128xbf16, #tpu.memory_space<vmem>>, vector<1x128xbf16>
    %7 = arith.extf %6 : vector<1x128xbf16> to vector<1x128xf32>
    %8 = vector.broadcast %7 : vector<1x128xf32> to vector<8x128xf32>
    %9 = arith.addf %5, %8 : vector<8x128xf32>
    %10 = arith.mulf %9, %9 : vector<8x128xf32>
    %11 = arith.mulf %9, %10 : vector<8x128xf32>
    %cst_6 = arith.constant 4.471500e-02 : f32
    %12 = vector.broadcast %cst_6 : f32 to vector<8x128xf32>
    %13 = arith.mulf %12, %11 : vector<8x128xf32>
    %14 = arith.addf %9, %13 : vector<8x128xf32>
    %cst_7 = arith.constant 0.797884583 : f32
    %15 = vector.broadcast %cst_7 : f32 to vector<8x128xf32>
    %16 = arith.mulf %15, %14 : vector<8x128xf32>
    %17 = math.tanh %16 : vector<8x128xf32>
    %cst_8 = arith.constant 1.000000e+00 : f32
    %18 = vector.broadcast %cst_8 : f32 to vector<8x128xf32>
    %19 = arith.addf %18, %17 : vector<8x128xf32>
    %cst_9 = arith.constant 5.000000e-01 : f32
    %20 = vector.broadcast %cst_9 : f32 to vector<8x128xf32>
    %21 = arith.mulf %20, %19 : vector<8x128xf32>
    %22 = arith.mulf %9, %21 : vector<8x128xf32>
    %c0_10 = arith.constant 0 : index
    %c0_11 = arith.constant 0 : index
    %23 = vector.load %arg7[%c0_10, %c0_11] : memref<8x128xf32, #tpu.memory_space<vmem>>, vector<8x128xf32>
    %24 = arith.truncf %22 : vector<8x128xf32> to vector<8x128xbf16>
    %c0_12 = arith.constant 0 : index
    %c0_13 = arith.constant 0 : index
    %25 = vector.load %arg5[%c0_12, %c0_13] : memref<128x128xbf16, #tpu.memory_space<vmem>>, vector<128x128xbf16>
    %cst_14 = arith.constant dense<0.000000e+00> : vector<8x128xf32>
    %26 = tpu.matmul %24, %25, %cst_14 {dimension_numbers = #tpu.dot_dimension_numbers<[1], [0], [0], [1], [0, 0, 1, 1], [], []>} : vector<8x128xbf16>, vector<128x128xbf16>, vector<8x128xf32> -> vector<8x128xf32>
    %27 = arith.addf %23, %26 : vector<8x128xf32>
    %c0_15 = arith.constant 0 : index
    %c0_16 = arith.constant 0 : index
    %28 = vector.load %arg7[%c0_15, %c0_16] : memref<8x128xf32, #tpu.memory_space<vmem>>, vector<8x128xf32>
    tpu.vector_store %arg7[%c0_15, %c0_16], %27 {strides = array<i32>} : memref<8x128xf32, #tpu.memory_space<vmem>>, vector<8x128xf32>,
    %c0_i32_17 = arith.constant 0 : i32
    %29 = arith.cmpi eq, %arg1, %c0_i32_17 : i32
    %30 = arith.extui %29 : i1 to i32
    %c0_i32_18 = arith.constant 0 : i32
    %31 = arith.cmpi ne, %30, %c0_i32_18 : i32
    scf.if %31 {
      %c0_19 = arith.constant 0 : index
      %c0_20 = arith.constant 0 : index
      %32 = vector.load %arg7[%c0_19, %c0_20] : memref<8x128xf32, #tpu.memory_space<vmem>>, vector<8x128xf32>
      %c0_21 = arith.constant 0 : index
      %c0_22 = arith.constant 0 : index
      %33 = vector.load %arg6[%c0_21, %c0_22] : memref<1x128xbf16, #tpu.memory_space<vmem>>, vector<1x128xbf16>
      %34 = arith.extf %33 : vector<1x128xbf16> to vector<1x128xf32>
      %35 = vector.broadcast %34 : vector<1x128xf32> to vector<8x128xf32>
      %36 = arith.addf %32, %35 : vector<8x128xf32>
      %c0_23 = arith.constant 0 : index
      %c0_24 = arith.constant 0 : index
      %37 = vector.load %arg7[%c0_23, %c0_24] : memref<8x128xf32, #tpu.memory_space<vmem>>, vector<8x128xf32>
      tpu.vector_store %arg7[%c0_23, %c0_24], %36 {strides = array<i32>} : memref<8x128xf32, #tpu.memory_space<vmem>>, vector<8x128xf32>,
    } else {
    }
    return
  }
  func.func @transform_0(%arg0: i32, %arg1: i32) -> (i32, i32) {
    %c0_i32 = arith.constant 0 : i32
    %c0_i32_0 = arith.constant 0 : i32
    return %arg0, %c0_i32 : i32, i32
  }
  func.func @transform_1(%arg0: i32, %arg1: i32) -> (i32, i32) {
    %c0_i32 = arith.constant 0 : i32
    %c0_i32_0 = arith.constant 0 : i32
    return %c0_i32, %arg1 : i32, i32
  }
  func.func @transform_2(%arg0: i32, %arg1: i32) -> (i32, i32) {
    %c0_i32 = arith.constant 0 : i32
    %c0_i32_0 = arith.constant 0 : i32
    return %c0_i32, %arg1 : i32, i32
  }
  func.func @transform_3(%arg0: i32, %arg1: i32) -> (i32, i32) {
    %c0_i32 = arith.constant 0 : i32
    %c0_i32_0 = arith.constant 0 : i32
    return %arg1, %c0_i32 : i32, i32
  }
  func.func @transform_4(%arg0: i32, %arg1: i32) -> (i32, i32) {
    %c0_i32 = arith.constant 0 : i32
    %c0_i32_0 = arith.constant 0 : i32
    %c0_i32_1 = arith.constant 0 : i32
    return %c0_i32, %c0_i32_0 : i32, i32
  }
  func.func @transform_5(%arg0: i32, %arg1: i32) -> (i32, i32) {
    %c0_i32 = arith.constant 0 : i32
    %c0_i32_0 = arith.constant 0 : i32
    return %arg0, %c0_i32 : i32, i32
  }
}

</mosaic_0001>

<llo_original>
// kernel: _mlp_forward.1
$region0: #{_mlp_forward.1}
  #allocation0 [shape = 'u32[]', space=smem, size = 0x4, offset = 0x4, fixed_abs, tag = 'smem constant byte address 0x4 - core index']
  #allocation1 [shape = 'u32[144,128]{1,0:T(1,128)}', space=vmem, size = 0x12000, scoped, tag = 'internal scratch']
  %s0 = inlined_call_operand.vmem [shape: bf16[16,128], index: 0, kind: input, shape index: {}]
  %s1 = inlined_call_operand.hbm [shape: bf16[128,128], index: 1, kind: input, shape index: {}]
  %s2 = inlined_call_operand.vmem [shape: bf16[1,128], index: 2, kind: input, shape index: {}]
  %s3 = inlined_call_operand.hbm [shape: bf16[128,128], index: 3, kind: input, shape index: {}]
  %s4 = inlined_call_operand.vmem [shape: bf16[1,128], index: 4, kind: input, shape index: {}]
  %s5 = inlined_call_operand.hbm [shape: f32[16,128], index: 5, kind: output, shape index: {}]
  %s6 = sld [smem:[#allocation0]]
  $region69: #{_mlp_forward.1} parent=0
    _
  %s8 = ssub.s32 1, %s6
  %s9 = scalar_select 0, %s8, %s6
  $region1: #{_mlp_forward.1} parent=0
    #allocation2 [shape = 'u8[32768]{0}', space=vmem, size = 0x8000, scoped, tag = 'input window, operand 1, single buffered']
    #allocation3 [shape = 's32[2]{0}', space=sflag, size = 0x8, scoped, tag = 'scoped memory for _mlp_forward.1']
    #allocation4 [shape = 's32[2]{0}', space=sflag, size = 0x8, scoped, tag = 'scoped memory for _mlp_forward.1']
    #allocation5 [shape = 'u8[32768]{0}', space=vmem, size = 0x8000, scoped, tag = 'input window, operand 3, single buffered']
    #allocation6 [shape = 's32[1]{0}', space=sflag, size = 0x4, scoped, tag = 'scoped memory for _mlp_forward.1']
    #allocation7 [shape = 'u8[8192]{0}', space=vmem, size = 0x2000, scoped, tag = 'output window, operand 0']
    %10 = vsyncpa [#allocation3], 0
    %11 = vsyncpa [#allocation6], 0
    %12 = vsyncpa [#allocation4], 0
    %s13 = scalar_lea.sflag [#allocation4], 1
    %14 = vsyncpa %s13, 0
    loop: start=0, step=1, limit=4
    $region2: #{_mlp_forward.1} parent=1 // loop_pre_header
      _
    $region3: #{_mlp_forward.1} parent=1 // loop_header
      %s16 = sphi 0, %s20
      %p17 = scmp.ge.s32.totalorder %s16, 4
      %s23 = sphi 0, %s35
      %s24 = sphi 0, %s31
      %s25 = sphi 0, %s23
      %s26 = sphi 0, %s24
      %s27 = sphi 0, %s25
      %s28 = sphi 0, %s26
      %s38 = sphi 0, %s40
      %s41 = sphi 0, %s38
      %s42 = sphi 0, %s41
      %s58 = sphi 0, %s42
      %s64 = sphi 0, %s66
      %s67 = sphi 0, %s64
      %s68 = sphi 0, %s67
      %s84 = sphi 0, %s68
      %s90 = sphi 0, %s92
      %s93 = sphi 0, %s90
      %s94 = sphi 0, %s93
      %s110 = sphi 0, %s94
      %s116 = sphi 0, %s118
      %s119 = sphi 0, %s116
      %s120 = sphi 0, %s119
      %s136 = sphi 0, %s120
      %s140 = sphi 0, %s140
      %s142 = sphi 0, %s140
      %s143 = sphi 0, %s142
      %s157 = sphi 0, %s143
      %s163 = sphi 0, %s165
      %s166 = sphi 0, %s163
      %s167 = sphi 0, %s166
      %s183 = sphi 0, %s167
    $region4: #{_mlp_forward.1} parent=1 // loop_header_branch
      %19 = sbr.rel (%p17) target = $region8
    $region5: #{_mlp_forward.1} parent=1 // loop_body
      %s21 = ssub.s32 %s16, 1
      %s22 = ssub.s32 %s16, 2
      %s29 = sadd.s32 1, %s24
      %p30 = scmp.ge.s32.totalorder %s29, 1
      %s31 = scalar_select %p30, 0, %s29
      %s32 = sadd.s32 1, %s23
      %s33 = scalar_select %p30, %s32, %s23
      %p34 = scmp.ge.s32.totalorder %s33, 2
      %s35 = scalar_select %p34, 0, %s33
      %s36 = ssub.s32 %s23, %s35
      %p37 = scmp.eq.s32.totalorder %s36, 0
      %s39 = sadd.s32 %s38, 1
      %s40 = scalar_select %p37, %s38, %s39
      %p43 = pneg %p37
      %p44 = scmp.eq.s32.totalorder %s16, 1
      %p45 = por %p43, %p44
      %p46 = scmp.ne.s32.totalorder %s38, %s41
      %p47 = scmp.eq.s32.totalorder %s16, 0
      %p48 = por %p46, %p47
      %p49 = scmp.ne.s32.totalorder %s38, %s41
      %p50 = scmp.eq.s32.totalorder %s21, 1
      %p51 = por %p49, %p50
      %p52 = scmp.ne.s32.totalorder %s41, %s42
      %p53 = scmp.eq.s32.totalorder %s21, 0
      %p54 = por %p52, %p53
      %p55 = scmp.ne.s32.totalorder %s41, %s42
      %p56 = scmp.eq.s32.totalorder %s22, 1
      %p57 = por %p55, %p56
      %p59 = scmp.ne.s32.totalorder %s42, %s58
      %p60 = scmp.eq.s32.totalorder %s22, 0
      %p61 = por %p59, %p60
      %s62 = ssub.s32 %s24, %s31
      %p63 = scmp.eq.s32.totalorder %s62, 0
      %s65 = sadd.s32 %s64, 1
      %s66 = scalar_select %p63, %s64, %s65
      %p69 = pneg %p63
      %p70 = scmp.eq.s32.totalorder %s16, 1
      %p71 = por %p69, %p70
      %p72 = scmp.ne.s32.totalorder %s64, %s67
      %p73 = scmp.eq.s32.totalorder %s16, 0
      %p74 = por %p72, %p73
      %p75 = scmp.ne.s32.totalorder %s64, %s67
      %p76 = scmp.eq.s32.totalorder %s21, 1
      %p77 = por %p75, %p76
      %p78 = scmp.ne.s32.totalorder %s67, %s68
      %p79 = scmp.eq.s32.totalorder %s21, 0
      %p80 = por %p78, %p79
      %p81 = scmp.ne.s32.totalorder %s67, %s68
      %p82 = scmp.eq.s32.totalorder %s22, 1
      %p83 = por %p81, %p82
      %p85 = scmp.ne.s32.totalorder %s68, %s84
      %p86 = scmp.eq.s32.totalorder %s22, 0
      %p87 = por %p85, %p86
      %s88 = ssub.s32 %s24, %s31
      %p89 = scmp.eq.s32.totalorder %s88, 0
      %s91 = sadd.s32 %s90, 1
      %s92 = scalar_select %p89, %s90, %s91
      %p95 = pneg %p89
      %p96 = scmp.eq.s32.totalorder %s16, 1
      %p97 = por %p95, %p96
      %p98 = scmp.ne.s32.totalorder %s90, %s93
      %p99 = scmp.eq.s32.totalorder %s16, 0
      %p100 = por %p98, %p99
      %p101 = scmp.ne.s32.totalorder %s90, %s93
      %p102 = scmp.eq.s32.totalorder %s21, 1
      %p103 = por %p101, %p102
      %p104 = scmp.ne.s32.totalorder %s93, %s94
      %p105 = scmp.eq.s32.totalorder %s21, 0
      %p106 = por %p104, %p105
      %p107 = scmp.ne.s32.totalorder %s93, %s94
      %p108 = scmp.eq.s32.totalorder %s22, 1
      %p109 = por %p107, %p108
      %p111 = scmp.ne.s32.totalorder %s94, %s110
      %p112 = scmp.eq.s32.totalorder %s22, 0
      %p113 = por %p111, %p112
      %s114 = ssub.s32 %s24, %s31
      %p115 = scmp.eq.s32.totalorder %s114, 0
      %s117 = sadd.s32 %s116, 1
      %s118 = scalar_select %p115, %s116, %s117
      %p121 = pneg %p115
      %p122 = scmp.eq.s32.totalorder %s16, 1
      %p123 = por %p121, %p122
      %p124 = scmp.ne.s32.totalorder %s116, %s119
      %p125 = scmp.eq.s32.totalorder %s16, 0
      %p126 = por %p124, %p125
      %p127 = scmp.ne.s32.totalorder %s116, %s119
      %p128 = scmp.eq.s32.totalorder %s21, 1
      %p129 = por %p127, %p128
      %p130 = scmp.ne.s32.totalorder %s119, %s120
      %p131 = scmp.eq.s32.totalorder %s21, 0
      %p132 = por %p130, %p131
      %p133 = scmp.ne.s32.totalorder %s119, %s120
      %p134 = scmp.eq.s32.totalorder %s22, 1
      %p135 = por %p133, %p134
      %p137 = scmp.ne.s32.totalorder %s120, %s136
      %p138 = scmp.eq.s32.totalorder %s22, 0
      %p139 = por %p137, %p138
      %s141 = sadd.s32 %s140, 1
      %p144 = scmp.eq.s32.totalorder %s16, 1
      %p145 = scmp.ne.s32.totalorder %s140, %s142
      %p146 = scmp.eq.s32.totalorder %s16, 0
      %p147 = por %p145, %p146
      %p148 = scmp.ne.s32.totalorder %s140, %s142
      %p149 = scmp.eq.s32.totalorder %s21, 1
      %p150 = por %p148, %p149
      %p151 = scmp.ne.s32.totalorder %s142, %s143
      %p152 = scmp.eq.s32.totalorder %s21, 0
      %p153 = por %p151, %p152
      %p154 = scmp.ne.s32.totalorder %s142, %s143
      %p155 = scmp.eq.s32.totalorder %s22, 1
      %p156 = por %p154, %p155
      %p158 = scmp.ne.s32.totalorder %s143, %s157
      %p159 = scmp.eq.s32.totalorder %s22, 0
      %p160 = por %p158, %p159
      %s161 = ssub.s32 %s23, %s35
      %p162 = scmp.eq.s32.totalorder %s161, 0
      %s164 = sadd.s32 %s163, 1
      %s165 = scalar_select %p162, %s163, %s164
      %p168 = pneg %p162
      %p169 = scmp.eq.s32.totalorder %s16, 1
      %p170 = por %p168, %p169
      %p171 = scmp.ne.s32.totalorder %s163, %s166
      %p172 = scmp.eq.s32.totalorder %s16, 0
      %p173 = por %p171, %p172
      %p174 = scmp.ne.s32.totalorder %s163, %s166
      %p175 = scmp.eq.s32.totalorder %s21, 1
      %p176 = por %p174, %p175
      %p177 = scmp.ne.s32.totalorder %s166, %s167
      %p178 = scmp.eq.s32.totalorder %s21, 0
      %p179 = por %p177, %p178
      %p180 = scmp.ne.s32.totalorder %s166, %s167
      %p181 = scmp.eq.s32.totalorder %s22, 1
      %p182 = por %p180, %p181
      %p184 = scmp.ne.s32.totalorder %s167, %s183
      %p185 = scmp.eq.s32.totalorder %s22, 0
      %p186 = por %p184, %p185
      %p187 = scmp.le.s32.totalorder 1, %s16
      %p188 = scmp.lt.s32.totalorder %s16, 3
      %p189 = pnand %p187, %p188
      %p190 = pneg %p189
      // Predicated region
      $region9: #{_mlp_forward.1} parent=5 // pred_check
        _
      $region10: #{_mlp_forward.1} parent=5 // pred_check_branch
        %192 = sbr.rel (%p189) target = $region12
      $region11: #{_mlp_forward.1} parent=5 // pred_region
        %s193 = ssub.s32 %s16, 1
        // Predicated region
        $region13: #{_mlp_forward.1} parent=11 // pred_check
          %p194 = pneg %p80
        $region14: #{_mlp_forward.1} parent=11 // pred_check_branch
          %196 = sbr.rel (%p194) target = $region16
        $region15: #{_mlp_forward.1} parent=11 // pred_region
          %s198 = ssub.s32 1024, 1024
          %199 = vsyncadd [#allocation3], %s198
          %s200 = smul.addr %s26, 64
          %s201 = scalar_lea.hbm %s1, %s200
          %s202 = sshll.u32 [#allocation2], 4
          %s203 = int_to_ptr.vmem [resolvable:$true] %s202
          %208 = dma.hbm_to_vmem [thread:$0]  %s201, 1024, %s203, [#allocation3], 64, 64, 4
        $region16: #{_mlp_forward.1} parent=11 // pred_fallthru
          _
        // Predicated region
        $region17: #{_mlp_forward.1} parent=11 // pred_check
          %p209 = pneg %p106
        $region18: #{_mlp_forward.1} parent=11 // pred_check_branch
          %211 = sbr.rel (%p209) target = $region20
        $region19: #{_mlp_forward.1} parent=11 // pred_region
          %p212 = scmp.lt.s32.totalorder %s26, 0
          %s213 = scalar_select %p212, %s26, 0
          %s214 = scalar_lea.vmem %s2, %s213
        $region20: #{_mlp_forward.1} parent=11 // pred_fallthru
          _
        // Predicated region
        $region21: #{_mlp_forward.1} parent=11 // pred_check
          %p215 = pneg %p132
        $region22: #{_mlp_forward.1} parent=11 // pred_check_branch
          %217 = sbr.rel (%p215) target = $region24
        $region23: #{_mlp_forward.1} parent=11 // pred_region
          %s218 = smul.u32 16, %s26
          %s220 = ssub.s32 1024, 1024
          %221 = vsyncadd [#allocation6], %s220
          %s222 = smul.addr %s218, 64
          %s223 = scalar_lea.hbm %s3, %s222
          %s224 = sshll.u32 [#allocation5], 4
          %s225 = int_to_ptr.vmem [resolvable:$true] %s224
          %230 = dma.hbm_to_vmem [thread:$0]  %s223, 1024, %s225, [#allocation6], 64, 64, 4
        $region24: #{_mlp_forward.1} parent=11 // pred_fallthru
          _
        // Predicated region
        $region25: #{_mlp_forward.1} parent=11 // pred_check
          %p231 = pneg %p153
        $region26: #{_mlp_forward.1} parent=11 // pred_check_branch
          %233 = sbr.rel (%p231) target = $region28
        $region27: #{_mlp_forward.1} parent=11 // pred_region
          _
        $region28: #{_mlp_forward.1} parent=11 // pred_fallthru
          _
      $region12: #{_mlp_forward.1} parent=5 // pred_fallthru
        _
      %p234 = scmp.lt.s32.totalorder %s16, 2
      // Predicated region
      $region29: #{_mlp_forward.1} parent=5 // pred_check
        %p235 = pneg %p234
      $region30: #{_mlp_forward.1} parent=5 // pred_check_branch
        %237 = sbr.rel (%p235) target = $region32
      $region31: #{_mlp_forward.1} parent=5 // pred_region
        // Predicated region
        $region33: #{_mlp_forward.1} parent=31 // pred_check
          %p238 = pneg %p48
        $region34: #{_mlp_forward.1} parent=31 // pred_check_branch
          %240 = sbr.rel (%p238) target = $region36
        $region35: #{_mlp_forward.1} parent=31 // pred_region
          %p241 = scmp.lt.s32.totalorder %s23, 1
          %s242 = scalar_select %p241, %s23, 1
          %s243 = smul.addr %s242, 4
          %s244 = scalar_lea.vmem %s0, %s243
        $region36: #{_mlp_forward.1} parent=31 // pred_fallthru
          _
      $region32: #{_mlp_forward.1} parent=5 // pred_fallthru
        _
      %p245 = scmp.le.s32.totalorder 1, %s16
      %p246 = scmp.lt.s32.totalorder %s16, 3
      %p247 = pnand %p245, %p246
      %p248 = pneg %p247
      // Predicated region
      $region37: #{_mlp_forward.1} parent=5 // pred_check
        _
      $region38: #{_mlp_forward.1} parent=5 // pred_check_branch
        %250 = sbr.rel (%p247) target = $region40
      $region39: #{_mlp_forward.1} parent=5 // pred_region
        %s251 = ssub.s32 %s16, 1
        // Predicated region
        $region41: #{_mlp_forward.1} parent=39 // pred_check
          %p252 = pneg %p80
        $region42: #{_mlp_forward.1} parent=39 // pred_check_branch
          %254 = sbr.rel (%p252) target = $region44
        $region43: #{_mlp_forward.1} parent=39 // pred_region
          %255 = dma.done [#allocation3], 1024
        $region44: #{_mlp_forward.1} parent=39 // pred_fallthru
          _
        // Predicated region
        $region45: #{_mlp_forward.1} parent=39 // pred_check
          %p256 = pneg %p132
        $region46: #{_mlp_forward.1} parent=39 // pred_check_branch
          %258 = sbr.rel (%p256) target = $region48
        $region47: #{_mlp_forward.1} parent=39 // pred_region
          %259 = dma.done [#allocation6], 1024
        $region48: #{_mlp_forward.1} parent=39 // pred_fallthru
          _
        %p260 = scmp.lt.s32.totalorder %s25, 1
        %s261 = scalar_select %p260, %s25, 1
        %s262 = smul.addr %s261, 4
        %s263 = scalar_lea.vmem %s0, %s262
        %p264 = pneg %p54
        %p265 = pneg %p51
        %p266 = pneg %p80
        %p267 = pneg %p77
        %p268 = scmp.lt.s32.totalorder %s26, 0
        %s269 = scalar_select %p268, %s26, 0
        %s270 = scalar_lea.vmem %s2, %s269
        %p271 = pneg %p106
        %p272 = pneg %p103
        %p273 = pneg %p132
        %p274 = pneg %p129
        %p275 = pneg %p153
        %p276 = pneg %p150
        %p277 = pneg %p179
        %p278 = pneg %p176
        %s279 = sand.u32 %s166, 1
        %s280 = scalar_lea.sflag [#allocation4], %s279
        %s281 = sand.u32 %s166, 1
        %s282 = smul.addr %s281, 8
        %s283 = scalar_lea.vmem [#allocation7], %s282
        %p284 = scmp.lt.s32.totalorder %s25, 1
        %s285 = scalar_select %p284, %s25, 1
        %s286 = smul.addr %s285, 4
        %s287 = scalar_lea.vmem %s0, %s286
        %p288 = scmp.lt.s32.totalorder %s26, 0
        %s289 = scalar_select %p288, %s26, 0
        %s290 = scalar_lea.vmem %s2, %s289
        %s291 = smul.u32 16, %s26
        %p293 = scmp.eq.s32.totalorder %s26, 0
        // Predicated region
        $region49: #{_mlp_forward.1} parent=39 // pred_check
          %p294 = pneg %p293
        $region50: #{_mlp_forward.1} parent=39 // pred_check_branch
          %296 = sbr.rel (%p294) target = $region52
        $region51: #{_mlp_forward.1} parent=39 // pred_region
          %297 = vst [vmem:[%s283] sm:$0xff] 0.0
        $region52: #{_mlp_forward.1} parent=39 // pred_fallthru
          _
        %v298 = vld [vmem:[%s287] sm:$0xf]
        %v299 = vld [vmem:[#allocation2] sm:$0xf]
        %v300 = vld [vmem:[#allocation2 + $0x4] sm:$0xf]
        %v301 = vld [vmem:[#allocation2 + $0x8] sm:$0xf]
        %v302 = vld [vmem:[#allocation2 + $0xc] sm:$0xf]
        %v303 = vld [vmem:[#allocation2 + $0x10] sm:$0xf]
        %v304 = vld [vmem:[#allocation2 + $0x14] sm:$0xf]
        %v305 = vld [vmem:[#allocation2 + $0x18] sm:$0xf]
        %v306 = vld [vmem:[#allocation2 + $0x1c] sm:$0xf]
        %v307 = vld [vmem:[#allocation2 + $0x20] sm:$0xf]
        %v308 = vld [vmem:[#allocation2 + $0x24] sm:$0xf]
        %v309 = vld [vmem:[#allocation2 + $0x28] sm:$0xf]
        %v310 = vld [vmem:[#allocation2 + $0x2c] sm:$0xf]
        %v311 = vld [vmem:[#allocation2 + $0x30] sm:$0xf]
        %v312 = vld [vmem:[#allocation2 + $0x34] sm:$0xf]
        %v313 = vld [vmem:[#allocation2 + $0x38] sm:$0xf]
        %v314 = vld [vmem:[#allocation2 + $0x3c] sm:$0xf]
        %v315 = vld [vmem:[%s290] sm:$0x1]
        %v316 = vunpack.c.l.bf16 %v315
        %v317 = vlaneseq
        %v318 = vshrl.u32 %v317, 7
        %v319 = vsub.s32 0, %v318
        %v320 = vrot.slane %v316, %v319
        %v337 = vunpack.c.l.b16 %v299
        %v338 = vunpack.c.l.b16 %v300
        %v339 = vunpack.c.l.b16 %v301
        %v340 = vunpack.c.l.b16 %v302
        %v341 = vunpack.c.l.b16 %v303
        %v342 = vunpack.c.l.b16 %v304
        %v343 = vunpack.c.l.b16 %v305
        %v344 = vunpack.c.l.b16 %v306
        %v345 = vunpack.c.l.b16 %v307
        %v346 = vunpack.c.l.b16 %v308
        %v347 = vunpack.c.l.b16 %v309
        %v348 = vunpack.c.l.b16 %v310
        %v349 = vunpack.c.l.b16 %v311
        %v350 = vunpack.c.l.b16 %v312
        %v351 = vunpack.c.l.b16 %v313
        %v352 = vunpack.c.l.b16 %v314
        %v353 = vpack.c.b16 %v338, %v337
        %v354 = vpack.c.b16 %v340, %v339
        %v355 = vpack.c.b16 %v342, %v341
        %v356 = vpack.c.b16 %v344, %v343
        %v357 = vpack.c.b16 %v346, %v345
        %v358 = vpack.c.b16 %v348, %v347
        %v359 = vpack.c.b16 %v350, %v349
        %v360 = vpack.c.b16 %v352, %v351
        %369 = vmatprep.subr.bf16.mxu0 0
        %370 = vmatpush1.bf16.msra.mxu0 %v353
        %371 = vmatprep.subr.bf16.mxu0 0
        %372 = vmatpush1.bf16.msra.mxu0 %v354
        %373 = vmatprep.subr.bf16.mxu0 0
        %374 = vmatpush1.bf16.msra.mxu0 %v355
        %375 = vmatprep.subr.bf16.mxu0 0
        %376 = vmatpush1.bf16.msra.mxu0 %v356
        %377 = vmatprep.subr.bf16.mxu0 0
        %378 = vmatpush1.bf16.msra.mxu0 %v357
        %379 = vmatprep.subr.bf16.mxu0 0
        %380 = vmatpush1.bf16.msra.mxu0 %v358
        %381 = vmatprep.subr.bf16.mxu0 0
        %382 = vmatpush1.bf16.msra.mxu0 %v359
        %383 = vmatprep.subr.bf16.mxu0 0
        %384 = vmatpush1.bf16.msra.mxu0 %v360
        %385 = vmatprep.subr.bf16.mxu0 0
        %386 = vmatpush1.bf16.msra.mxu0 0
        %387 = vmatprep.subr.bf16.mxu0 0
        %388 = vmatpush1.bf16.msra.mxu0 0
        %389 = vmatprep.subr.bf16.mxu0 0
        %390 = vmatpush1.bf16.msra.mxu0 0
        %391 = vmatprep.subr.bf16.mxu0 0
        %392 = vmatpush1.bf16.msra.mxu0 0
        %393 = vmatprep.subr.bf16.mxu0 0
        %394 = vmatpush1.bf16.msra.mxu0 0
        %395 = vmatprep.subr.bf16.mxu0 0
        %396 = vmatpush1.bf16.msra.mxu0 0
        %397 = vmatprep.subr.bf16.mxu0 0
        %398 = vmatpush1.bf16.msra.mxu0 0
        %399 = vmatprep.subr.bf16.mxu0 0
        %400 = vmatpush1.bf16.msra.mxu0 0
        %401 = vmatprep.mubr.bf16.mxu0 0
        %402 = vmatmul.mubr.bf16.gmra.mrb[0].mxu0 %v298
        %v403 = vpop.f32.mrb[0].mxu0
        %v404 = vadd.f32 %v320, %v403
        %v405 = vpop.f32.mrb[0].mxu0
        %v406 = vpop.f32.mrb[0].mxu0
        %v407 = vpop.f32.mrb[0].mxu0
        %408 = vdwg.mxu0
        %v409 = vmul.f32 %v404, %v404
        %v410 = vmul.f32 %v404, %v409
        %v411 = vmul.f32 %v410, 0.044715
        %v412 = vadd.f32 %v404, %v411
        %v413 = vmul.f32 %v412, 0.7978846
        %v414 = vtanh.pop %v413
        %v415 = vadd.f32 %v414, 1.0
        %v416 = vmul.f32 %v415, 0.5
        %v417 = vmul.f32 %v404, %v416
        %v418 = vld [vmem:[%s283] sm:$0xff]
        %v419 = vpack.c.bf16 %v417, %v417
        %v420 = vld [vmem:[#allocation5] sm:$0xf]
        %v421 = vld [vmem:[#allocation5 + $0x4] sm:$0xf]
        %v422 = vld [vmem:[#allocation5 + $0x8] sm:$0xf]
        %v423 = vld [vmem:[#allocation5 + $0xc] sm:$0xf]
        %v424 = vld [vmem:[#allocation5 + $0x10] sm:$0xf]
        %v425 = vld [vmem:[#allocation5 + $0x14] sm:$0xf]
        %v426 = vld [vmem:[#allocation5 + $0x18] sm:$0xf]
        %v427 = vld [vmem:[#allocation5 + $0x1c] sm:$0xf]
        %v428 = vld [vmem:[#allocation5 + $0x20] sm:$0xf]
        %v429 = vld [vmem:[#allocation5 + $0x24] sm:$0xf]
        %v430 = vld [vmem:[#allocation5 + $0x28] sm:$0xf]
        %v431 = vld [vmem:[#allocation5 + $0x2c] sm:$0xf]
        %v432 = vld [vmem:[#allocation5 + $0x30] sm:$0xf]
        %v433 = vld [vmem:[#allocation5 + $0x34] sm:$0xf]
        %v434 = vld [vmem:[#allocation5 + $0x38] sm:$0xf]
        %v435 = vld [vmem:[#allocation5 + $0x3c] sm:$0xf]
        %v452 = vunpack.c.l.b16 %v420
        %v453 = vunpack.c.l.b16 %v421
        %v454 = vunpack.c.l.b16 %v422
        %v455 = vunpack.c.l.b16 %v423
        %v456 = vunpack.c.l.b16 %v424
        %v457 = vunpack.c.l.b16 %v425
        %v458 = vunpack.c.l.b16 %v426
        %v459 = vunpack.c.l.b16 %v427
        %v460 = vunpack.c.l.b16 %v428
        %v461 = vunpack.c.l.b16 %v429
        %v462 = vunpack.c.l.b16 %v430
        %v463 = vunpack.c.l.b16 %v431
        %v464 = vunpack.c.l.b16 %v432
        %v465 = vunpack.c.l.b16 %v433
        %v466 = vunpack.c.l.b16 %v434
        %v467 = vunpack.c.l.b16 %v435
        %v468 = vpack.c.b16 %v453, %v452
        %v469 = vpack.c.b16 %v455, %v454
        %v470 = vpack.c.b16 %v457, %v456
        %v471 = vpack.c.b16 %v459, %v458
        %v472 = vpack.c.b16 %v461, %v460
        %v473 = vpack.c.b16 %v463, %v462
        %v474 = vpack.c.b16 %v465, %v464
        %v475 = vpack.c.b16 %v467, %v466
        %484 = vmatprep.subr.bf16.mxu0 0
        %485 = vmatpush1.bf16.msra.mxu0 %v468
        %486 = vmatprep.subr.bf16.mxu0 0
        %487 = vmatpush1.bf16.msra.mxu0 %v469
        %488 = vmatprep.subr.bf16.mxu0 0
        %489 = vmatpush1.bf16.msra.mxu0 %v470
        %490 = vmatprep.subr.bf16.mxu0 0
        %491 = vmatpush1.bf16.msra.mxu0 %v471
        %492 = vmatprep.subr.bf16.mxu0 0
        %493 = vmatpush1.bf16.msra.mxu0 %v472
        %494 = vmatprep.subr.bf16.mxu0 0
        %495 = vmatpush1.bf16.msra.mxu0 %v473
        %496 = vmatprep.subr.bf16.mxu0 0
        %497 = vmatpush1.bf16.msra.mxu0 %v474
        %498 = vmatprep.subr.bf16.mxu0 0
        %499 = vmatpush1.bf16.msra.mxu0 %v475
        %500 = vmatprep.subr.bf16.mxu0 0
        %501 = vmatpush1.bf16.msra.mxu0 0
        %502 = vmatprep.subr.bf16.mxu0 0
        %503 = vmatpush1.bf16.msra.mxu0 0
        %504 = vmatprep.subr.bf16.mxu0 0
        %505 = vmatpush1.bf16.msra.mxu0 0
        %506 = vmatprep.subr.bf16.mxu0 0
        %507 = vmatpush1.bf16.msra.mxu0 0
        %508 = vmatprep.subr.bf16.mxu0 0
        %509 = vmatpush1.bf16.msra.mxu0 0
        %510 = vmatprep.subr.bf16.mxu0 0
        %511 = vmatpush1.bf16.msra.mxu0 0
        %512 = vmatprep.subr.bf16.mxu0 0
        %513 = vmatpush1.bf16.msra.mxu0 0
        %514 = vmatprep.subr.bf16.mxu0 0
        %515 = vmatpush1.bf16.msra.mxu0 0
        %516 = vmatprep.mubr.bf16.mxu0 0
        %517 = vmatmul.mubr.bf16.gmra.mrb[0].mxu0 %v419
        %v518 = vpop.f32.mrb[0].mxu0
        %v519 = vadd.f32 0.0, %v518
        %v520 = vpop.f32.mrb[0].mxu0
        %v521 = vpop.f32.mrb[0].mxu0
        %v522 = vpop.f32.mrb[0].mxu0
        %523 = vdwg.mxu0
        %v524 = vadd.f32 %v418, %v519
        %525 = vst [vmem:[%s283] sm:$0xff] %v524
        // Predicated region
        $region53: #{_mlp_forward.1} parent=39 // pred_check
          %p526 = pneg %p293
        $region54: #{_mlp_forward.1} parent=39 // pred_check_branch
          %528 = sbr.rel (%p526) target = $region56
        $region55: #{_mlp_forward.1} parent=39 // pred_region
          %v529 = vld [vmem:[%s283] sm:$0xff]
          %v530 = vld [vmem:[%s4] sm:$0x1]
          %v531 = vunpack.c.l.bf16 %v530
          %v532 = vlaneseq
          %v533 = vshrl.u32 %v532, 7
          %v534 = vsub.s32 0, %v533
          %v535 = vrot.slane %v531, %v534
          %v536 = vadd.f32 %v529, %v535
          %537 = vst [vmem:[%s283] sm:$0xff] %v536
        $region56: #{_mlp_forward.1} parent=39 // pred_fallthru
          _
        %s538 = sand.u32 %s166, 1
        %s539 = scalar_lea.sflag [#allocation4], %s538
        %s540 = sand.u32 %s166, 1
        %s541 = smul.addr %s540, 8
        %s542 = scalar_lea.vmem [#allocation7], %s541
        // Predicated region
        $region57: #{_mlp_forward.1} parent=39 // pred_check
          %p543 = pneg %p176
        $region58: #{_mlp_forward.1} parent=39 // pred_check_branch
          %545 = sbr.rel (%p543) target = $region60
        $region59: #{_mlp_forward.1} parent=39 // pred_region
          %s547 = ssub.s32 128, 128
          %548 = vsyncadd %s539, %s547
          %s549 = smul.addr %s25, 128
          %s550 = scalar_lea.hbm %s5, %s549
          %s552 = sshll.u32 %s542, 4
          %s553 = int_to_ptr.vmem [resolvable:$true] %s552
          %555 = dma.vmem_to_hbm [thread:$0]  %s553, 128, %s550, %s539
        $region60: #{_mlp_forward.1} parent=39 // pred_fallthru
          _
      $region40: #{_mlp_forward.1} parent=5 // pred_fallthru
        _
      %p556 = scmp.le.s32.totalorder 2, %s16
      // Predicated region
      $region61: #{_mlp_forward.1} parent=5 // pred_check
        %p557 = pneg %p556
      $region62: #{_mlp_forward.1} parent=5 // pred_check_branch
        %559 = sbr.rel (%p557) target = $region64
      $region63: #{_mlp_forward.1} parent=5 // pred_region
        %s560 = ssub.s32 %s16, 2
        // Predicated region
        $region65: #{_mlp_forward.1} parent=63 // pred_check
          %p561 = pneg %p182
        $region66: #{_mlp_forward.1} parent=63 // pred_check_branch
          %563 = sbr.rel (%p561) target = $region68
        $region67: #{_mlp_forward.1} parent=63 // pred_region
          %s564 = sand.u32 %s167, 1
          %s565 = scalar_lea.sflag [#allocation4], %s564
          %s566 = sand.u32 %s167, 1
          %s567 = smul.addr %s566, 8
          %s568 = scalar_lea.vmem [#allocation7], %s567
          %569 = dma.done %s565, 128
        $region68: #{_mlp_forward.1} parent=63 // pred_fallthru
          _
      $region64: #{_mlp_forward.1} parent=5 // pred_fallthru
        _
    $region6: #{_mlp_forward.1} parent=1 // loop_footer
      %s20 = sadd.s32 1, %s16
    $region7: #{_mlp_forward.1} parent=1 // loop_footer_branch
      %15 = sbr.rel target = $region3
    $region8: #{_mlp_forward.1} parent=1 // loop_exit
      _
    %570 = vsyncpa [#allocation3], 1
    %s571 = scalar_lea.sflag [#allocation3], 1
    %572 = vsyncpa %s571, 1
    %573 = vsyncpa [#allocation6], 1
    %574 = vsyncpa [#allocation4], 1
    %s575 = scalar_lea.sflag [#allocation4], 1
    %576 = vsyncpa %s575, 1

</llo_original>
